<compile_context>
chip_gen: v7x
topology: tpu7x:2x2x1
jax: 0.10.0
libtpu: 0.0.40
codegen_flags: <defaults>
</compile_context>

<pallas_src>
import functools

import jax
import jax.numpy as jnp
from jax.experimental import pallas as pl
from jax.experimental.pallas import tpu as pltpu


def _static_pow(base, gamma, eps):
    """base ** gamma for a *static* gamma.

    Small integer gammas use repeated multiplication (pure VPU, no EUP work);
    non-integer gammas fall back to exp(gamma*log(base)) with a base==0 guard.
    (The eps clamp inside the log makes base < eps behave like base == eps,
    a negligible divergence from jnp.power for the default gammas.)
    """
    g = float(gamma)
    if g == 0.0:
        return jnp.ones_like(base)
    if g.is_integer() and 0.0 < g <= 32.0:
        gi = int(g)
        result = None
        cur = base
        while gi:
            if gi & 1:
                result = cur if result is None else result * cur
            gi >>= 1
            if gi:
                cur = cur * cur
        return result
    return jnp.where(base <= 0.0, jnp.zeros_like(base),
                     jnp.exp(g * jnp.log(jnp.maximum(base, eps))))


def _asl_kernel(x_ref, y_ref, out_ref, *, gamma_neg, gamma_pos, clip, eps,
                n_valid, tile_rows, tiles_per_p, needs_mask, binary_targets):
    # Zero the resident partial-sum block at the start of each reduction pass.
    @pl.when(pl.program_id(1) == 0)
    def _():
        out_ref[...] = jnp.zeros_like(out_ref)

    x = x_ref[...].astype(jnp.float32)
    y = y_ref[...].astype(jnp.float32)

    # sigmoid(x) = 0.5*tanh(0.5*x) + 0.5  -> single EUP transcendental.
    t = jnp.tanh(x * 0.5)
    xs_pos = 0.5 * t + 0.5
    xs_neg = 0.5 - 0.5 * t
    if clip is not None and clip > 0:
        xs_neg = jnp.minimum(xs_neg + clip, 1.0)

    if binary_targets:
        # y is a {0,1} multi-hot vector (the module's stated contract):
        #   y*log(p) + (1-y)*log(q) == log(select(y, p, q))
        #   pt = xs_pos*y + xs_neg*(1-y) == select(y, xs_pos, xs_neg)
        is_pos = y > 0.0
        prob = jnp.where(is_pos, xs_pos, xs_neg)
        loss = jnp.log(jnp.maximum(prob, eps))
        if gamma_neg > 0 or gamma_pos > 0:
            base = 1.0 - prob
            loss = loss * jnp.where(is_pos,
                                    _static_pow(base, gamma_pos, eps),
                                    _static_pow(base, gamma_neg, eps))
    else:
        # General (soft-label) path, mirrors the PyTorch code verbatim.
        loss = (y * jnp.log(jnp.maximum(xs_pos, eps))
                + (1.0 - y) * jnp.log(jnp.maximum(xs_neg, eps)))
        if gamma_neg > 0 or gamma_pos > 0:
            base = 1.0 - (xs_pos * y + xs_neg * (1.0 - y))
            gam = gamma_pos * y + gamma_neg * (1.0 - y)
            w = jnp.where(base <= 0.0, jnp.zeros_like(base),
                          jnp.exp(gam * jnp.log(jnp.maximum(base, eps))))
            loss = loss * w

    c = loss.shape[-1]

    def accum(vals):
        # Lane-dense (8, C) partial sum: reduce only over whole sublane groups
        # (plain vreg adds); the 128-lane reduce + negation happen outside.
        out_ref[...] += jnp.sum(vals.reshape(tile_rows // 8, 8, c), axis=0)

    if needs_mask:
        # Only the ragged / duplicate tiles pay for the iota+compare+select;
        # full in-bounds tiles take the unmasked branch (pure accumulation).
        tile_idx = pl.program_id(0) * tiles_per_p + pl.program_id(1)
        row0 = tile_idx * tile_rows
        is_ragged = row0 + tile_rows > n_valid

        @pl.when(is_ragged)
        def _():
            rows = row0 + jax.lax.broadcasted_iota(jnp.int32, loss.shape, 0)
            # select (not multiply) so NaN/Inf from unspecified OOB rows
            # cannot propagate into the sum.
            accum(jnp.where(rows < n_valid, loss, 0.0))

        @pl.when(jnp.logical_not(is_ragged))
        def _():
            accum(loss)
    else:
        accum(loss)


def _row_alignment(dtype):
    itemsize = jnp.dtype(dtype).itemsize
    if itemsize >= 4:
        return 8
    if itemsize == 2:
        return 16
    return 32


def _tpu_vmem_and_cores():
    """Best-effort (vmem_capacity_bytes, tensorcore_count) query."""
    vmem = 64 * 1024 * 1024   # conservative fallback (v7x per-TC VMEM)
    cores = None
    try:
        info = pltpu.get_tpu_info()
        vmem = int(getattr(info, "vmem_capacity_bytes", vmem)) or vmem
        for name in ("num_cores", "core_count", "num_tensorcores"):
            val = getattr(info, name, None)
            if val:
                cores = int(val)
                break
    except Exception:
        pass
    if cores is None:
        try:
            cores = int(getattr(jax.devices()[0], "num_cores", 0)) or None
        except Exception:
            pass
    return vmem, cores


def asymmetric_loss(x, y, *, gamma_neg=4, gamma_pos=1, clip=0.05, eps=1e-8,
                    tile_rows=None, num_partials=None, binary_targets=True):
    """Pallas implementation of AsymmetricLoss.forward.  Returns a scalar.

    x: (N, C) logits (f32 or bf16); y: (N, C) targets (f32 / bf16 / int).
    binary_targets=True assumes y is a {0,1} multi-hot vector (the module's
    documented contract) and uses a cheaper select-based path; pass
    binary_targets=False if y may contain soft (non-{0,1}) labels.
    Narrow input dtypes (e.g. bf16) should be produced by the caller -- they
    halve HBM traffic; all math is done in f32 inside the kernel.
    """
    assert x.shape == y.shape and x.ndim == 2
    n, c = x.shape
    x_it = jnp.dtype(x.dtype).itemsize
    y_it = jnp.dtype(y.dtype).itemsize

    vmem_bytes, cores = _tpu_vmem_and_cores()
    if num_partials is None:
        num_partials = cores if cores else 2

    # --- tile-size selection (VMEM-capacity & dtype aware) -------------------
    align = max(_row_alignment(x.dtype), _row_alignment(y.dtype))
    c_pad = pl.cdiv(c, 128) * 128
    # Per-row VMEM cost: double-buffered inputs + ~6 live f32 intermediates.
    per_row = c_pad * (2 * (x_it + y_it) + 6 * 4)
    budget = int(0.45 * vmem_bytes)
    max_rows = max(align, (budget // per_row) // align * align)
    if tile_rows is None:
        tile_rows = max_rows
    tile_rows = max(align, min(tile_rows, max_rows) // align * align)
    tile_rows = min(tile_rows, pl.cdiv(n, align) * align)

    num_tiles = pl.cdiv(n, tile_rows)
    # Leading "parallel" axis -> independent partial sums (both TCs on v7x).
    p = max(1, min(num_partials, num_tiles))
    tiles_per_p = pl.cdiv(num_tiles, p)
    needs_mask = (p * tiles_per_p * tile_rows) != n

    # Keep every DMA in-bounds: tile indices past the end are clamped to the
    # last real block (re-read, then fully zeroed by the in-kernel row mask).
    last_block = num_tiles - 1
    if p * tiles_per_p == num_tiles:
        def in_index_map(pi, ii):
            return (pi * tiles_per_p + ii, 0)
    else:
        def in_index_map(pi, ii):
            return (jnp.minimum(pi * tiles_per_p + ii, last_block), 0)

    kernel = functools.partial(
        _asl_kernel,
        gamma_neg=gamma_neg, gamma_pos=gamma_pos, clip=clip, eps=eps,
        n_valid=n, tile_rows=tile_rows, tiles_per_p=tiles_per_p,
        needs_mask=needs_mask, binary_targets=binary_targets)

    # VMEM limit: double-buffered inputs + f32 intermediates + headroom.
    needed = per_row * tile_rows + 2 * p * 8 * c_pad * 4 + (4 << 20)
    vmem_limit = int(min(0.8 * vmem_bytes, max(needed, 32 << 20)))

    gammas_int = float(gamma_pos).is_integer() and float(gamma_neg).is_integer()
    trans_per_elem = (2 if binary_targets else 5) + (0 if gammas_int else 2)
    cost = pl.CostEstimate(
        flops=24 * n * c,
        transcendentals=trans_per_elem * n * c,
        bytes_accessed=n * c * (x_it + y_it) + p * 8 * c * 4)

    partials = pl.pallas_call(
        kernel,
        out_shape=jax.ShapeDtypeStruct((p * 8, c), jnp.float32),
        grid_spec=pltpu.PrefetchScalarGridSpec(
            num_scalar_prefetch=0,
            grid=(p, tiles_per_p),
            in_specs=[
                pl.BlockSpec((tile_rows, c), in_index_map),
                pl.BlockSpec((tile_rows, c), in_index_map),
            ],
            out_specs=pl.BlockSpec((8, c), lambda pi, ii: (pi, 0)),
        ),
        compiler_params=pltpu.CompilerParams(
            dimension_semantics=("parallel", "arbitrary"),
            vmem_limit_bytes=vmem_limit),
        cost_estimate=cost,
    )(x, y)

    # Final cross-lane reduction + negation (tiny; left to XLA).
    return -jnp.sum(partials)


def _asymmetric_loss_ref(x, y, gamma_neg=4, gamma_pos=1, clip=0.05, eps=1e-8):
    """Pure-JAX reference mirroring the PyTorch forward."""
    x = x.astype(jnp.float32)
    y = y.astype(jnp.float32)
    xs_pos = jax.nn.sigmoid(x)
    xs_neg = 1.0 - xs_pos
    if clip is not None and clip > 0:
        xs_neg = jnp.minimum(xs_neg + clip, 1.0)
    los_pos = y * jnp.log(jnp.maximum(xs_pos, eps))
    los_neg = (1.0 - y) * jnp.log(jnp.maximum(xs_neg, eps))
    loss = los_pos + los_neg
    pt = xs_pos * y + xs_neg * (1.0 - y)
    gamma = gamma_pos * y + gamma_neg * (1.0 - y)
    loss = loss * jnp.power(1.0 - pt, gamma)
    return -jnp.sum(loss)


if __name__ == "__main__":
    key = jax.random.PRNGKey(0)
    kx, ky = jax.random.split(key)

    # Small shapes consistent with a multi-label classification head.
    N, C = 16, 128
    x = jax.random.normal(kx, (N, C), dtype=jnp.float32)
    y = (jax.random.uniform(ky, (N, C)) > 0.7).astype(jnp.float32)  # multi-hot

    out = jax.block_until_ready(asymmetric_loss(x, y))
    ref = _asymmetric_loss_ref(x, y)
    assert jnp.allclose(out, ref, rtol=1e-4, atol=1e-3), (out, ref)

    # Ragged batch + non-multiple-of-128 class count: exercises the
    # pl.when-gated OOB row mask (no wrapper-side padding pass any more).
    kx2, ky2 = jax.random.split(jax.random.PRNGKey(1))
    x2 = jax.random.normal(kx2, (37, 200), dtype=jnp.float32)
    y2 = (jax.random.uniform(ky2, (37, 200)) > 0.6).astype(jnp.float32)
    out2 = jax.block_until_ready(asymmetric_loss(x2, y2))
    ref2 = _asymmetric_loss_ref(x2, y2)
    assert jnp.allclose(out2, ref2, rtol=1e-4, atol=1e-3), (out2, ref2)

    # Narrow input dtypes (halve HBM traffic); math is still f32 in-kernel.
    xb = x.astype(jnp.bfloat16)
    yb = y.astype(jnp.bfloat16)
    out3 = jax.block_until_ready(asymmetric_loss(xb, yb))
    ref3 = _asymmetric_loss_ref(xb.astype(jnp.float32), yb.astype(jnp.float32))
    assert jnp.allclose(out3, ref3, rtol=1e-4, atol=1e-3), (out3, ref3)

    # Two-partial (per-TensorCore) split with an odd tile count: exercises the
    # clamped index_map + fully-masked duplicate tile path.
    kx4, ky4 = jax.random.split(jax.random.PRNGKey(2))
    x4 = jax.random.normal(kx4, (129, 128), dtype=jnp.float32)
    y4 = (jax.random.uniform(ky4, (129, 128)) > 0.5).astype(jnp.float32)
    out4 = jax.block_until_ready(
        asymmetric_loss(x4, y4, tile_rows=64, num_partials=2))
    ref4 = _asymmetric_loss_ref(x4, y4)
    assert jnp.allclose(out4, ref4, rtol=1e-4, atol=1e-3), (out4, ref4)

    print("KERNEL_OK")
</pallas_src>

<mosaic_0001>
module attributes {stable_mosaic.version = 11 : i64} {
  func.func @_asl_kernel(%arg0: i32, %arg1: i32, %arg2: memref<16x128xf32, #tpu.memory_space<vmem>>, %arg3: memref<16x128xf32, #tpu.memory_space<vmem>>, %arg4: memref<8x128xf32, #tpu.memory_space<vmem>>) attributes {dimension_semantics = [#tpu.dimension_semantics<parallel>, #tpu.dimension_semantics<arbitrary>], iteration_bounds = array<i64: 1, 1>, scalar_prefetch = 0 : i64, scratch_operands = 0 : i64, tpu.core_type = #tpu.core_type<tc>, window_params = [{transform_indices = @transform_0, window_bounds = array<i64: 16, 128>}, {transform_indices = @transform_1, window_bounds = array<i64: 16, 128>}, {transform_indices = @transform_2, window_bounds = array<i64: 8, 128>}]} {
    %c0_i32 = arith.constant 0 : i32
    %0 = arith.cmpi eq, %arg1, %c0_i32 : i32
    %1 = arith.extui %0 : i1 to i32
    %c0_i32_0 = arith.constant 0 : i32
    %2 = arith.cmpi ne, %1, %c0_i32_0 : i32
    scf.if %2 {
      %cst_18 = arith.constant 0.000000e+00 : f32
      %37 = vector.broadcast %cst_18 : f32 to vector<8x128xf32>
      %c0_19 = arith.constant 0 : index
      %c0_20 = arith.constant 0 : index
      %38 = vector.load %arg4[%c0_19, %c0_20] : memref<8x128xf32, #tpu.memory_space<vmem>>, vector<8x128xf32>
      tpu.vector_store %arg4[%c0_19, %c0_20], %37 {strides = array<i32>} : memref<8x128xf32, #tpu.memory_space<vmem>>, vector<8x128xf32>,
    } else {
    }
    %c0 = arith.constant 0 : index
    %c0_1 = arith.constant 0 : index
    %3 = vector.load %arg2[%c0, %c0_1] : memref<16x128xf32, #tpu.memory_space<vmem>>, vector<16x128xf32>
    %c0_2 = arith.constant 0 : index
    %c0_3 = arith.constant 0 : index
    %4 = vector.load %arg3[%c0_2, %c0_3] : memref<16x128xf32, #tpu.memory_space<vmem>>, vector<16x128xf32>
    %cst = arith.constant 5.000000e-01 : f32
    %5 = vector.broadcast %cst : f32 to vector<16x128xf32>
    %6 = arith.mulf %3, %5 : vector<16x128xf32>
    %7 = math.tanh %6 : vector<16x128xf32>
    %cst_4 = arith.constant 5.000000e-01 : f32
    %8 = vector.broadcast %cst_4 : f32 to vector<16x128xf32>
    %9 = arith.mulf %8, %7 : vector<16x128xf32>
    %cst_5 = arith.constant 5.000000e-01 : f32
    %10 = vector.broadcast %cst_5 : f32 to vector<16x128xf32>
    %11 = arith.addf %9, %10 : vector<16x128xf32>
    %cst_6 = arith.constant 5.000000e-01 : f32
    %12 = vector.broadcast %cst_6 : f32 to vector<16x128xf32>
    %13 = arith.mulf %12, %7 : vector<16x128xf32>
    %cst_7 = arith.constant 5.000000e-01 : f32
    %14 = vector.broadcast %cst_7 : f32 to vector<16x128xf32>
    %15 = arith.subf %14, %13 : vector<16x128xf32>
    %cst_8 = arith.constant 5.000000e-02 : f32
    %16 = vector.broadcast %cst_8 : f32 to vector<16x128xf32>
    %17 = arith.addf %15, %16 : vector<16x128xf32>
    %cst_9 = arith.constant 1.000000e+00 : f32
    %18 = vector.broadcast %cst_9 : f32 to vector<16x128xf32>
    %19 = arith.minimumf %17, %18 : vector<16x128xf32>
    %cst_10 = arith.constant 0.000000e+00 : f32
    %20 = vector.broadcast %cst_10 : f32 to vector<16x128xf32>
    %21 = arith.cmpf ogt, %4, %20 : vector<16x128xf32>
    %22 = arith.select %21, %11, %19 : vector<16x128xi1>, vector<16x128xf32>
    %cst_11 = arith.constant 9.99999993E-9 : f32
    %23 = vector.broadcast %cst_11 : f32 to vector<16x128xf32>
    %24 = arith.maximumf %22, %23 : vector<16x128xf32>
    %25 = math.log %24 : vector<16x128xf32>
    %cst_12 = arith.constant 1.000000e+00 : f32
    %26 = vector.broadcast %cst_12 : f32 to vector<16x128xf32>
    %27 = arith.subf %26, %22 : vector<16x128xf32>
    %28 = arith.mulf %27, %27 : vector<16x128xf32>
    %29 = arith.mulf %28, %28 : vector<16x128xf32>
    %30 = arith.select %21, %27, %29 : vector<16x128xi1>, vector<16x128xf32>
    %31 = arith.mulf %25, %30 : vector<16x128xf32>
    %c0_13 = arith.constant 0 : index
    %c0_14 = arith.constant 0 : index
    %32 = vector.load %arg4[%c0_13, %c0_14] : memref<8x128xf32, #tpu.memory_space<vmem>>, vector<8x128xf32>
    %33 = vector.shape_cast %31 : vector<16x128xf32> to vector<2x8x128xf32>
    %cst_15 = arith.constant dense<0.000000e+00> : vector<8x128xf32>
    %34 = vector.multi_reduction <add>, %33, %cst_15 [0] : vector<2x8x128xf32> to vector<8x128xf32>
    %35 = arith.addf %32, %34 : vector<8x128xf32>
    %c0_16 = arith.constant 0 : index
    %c0_17 = arith.constant 0 : index
    %36 = vector.load %arg4[%c0_16, %c0_17] : memref<8x128xf32, #tpu.memory_space<vmem>>, vector<8x128xf32>
    tpu.vector_store %arg4[%c0_16, %c0_17], %35 {strides = array<i32>} : memref<8x128xf32, #tpu.memory_space<vmem>>, vector<8x128xf32>,
    return
  }
  func.func @transform_0(%arg0: i32, %arg1: i32) -> (i32, i32) {
    %c1_i32 = arith.constant 1 : i32
    %0 = arith.muli %arg0, %c1_i32 : i32
    %1 = arith.addi %0, %arg1 : i32
    %c0_i32 = arith.constant 0 : i32
    %c0_i32_0 = arith.constant 0 : i32
    return %1, %c0_i32 : i32, i32
  }
  func.func @transform_1(%arg0: i32, %arg1: i32) -> (i32, i32) {
    %c1_i32 = arith.constant 1 : i32
    %0 = arith.muli %arg0, %c1_i32 : i32
    %1 = arith.addi %0, %arg1 : i32
    %c0_i32 = arith.constant 0 : i32
    %c0_i32_0 = arith.constant 0 : i32
    return %1, %c0_i32 : i32, i32
  }
  func.func @transform_2(%arg0: i32, %arg1: i32) -> (i32, i32) {
    %c0_i32 = arith.constant 0 : i32
    %c0_i32_0 = arith.constant 0 : i32
    return %arg0, %c0_i32 : i32, i32
  }
}

</mosaic_0001>

<llo_original>
// kernel: tpu_custom_call.1
$region0: #{tpu_custom_call.1}
  #allocation0 [shape = 'u32[]', space=smem, size = 0x4, offset = 0x4, fixed_abs, tag = 'smem constant byte address 0x4 - core index']
  #allocation1 [shape = 'u32[144,128]{1,0:T(1,128)}', space=vmem, size = 0x12000, scoped, tag = 'internal scratch']
  %s0 = inlined_call_operand.hbm [shape: f32[16,128], index: 0, kind: input, shape index: {}]
  %s1 = inlined_call_operand.hbm [shape: f32[16,128], index: 1, kind: input, shape index: {}]
  %s2 = inlined_call_operand.hbm [shape: f32[8,128], index: 2, kind: output, shape index: {}]
  %s3 = sld [smem:[#allocation0]]
  $region30: #{tpu_custom_call.1} parent=0
    _
  %s5 = ssub.s32 1, %s3
  %s6 = scalar_select 0, %s5, %s3
  $region1: #{tpu_custom_call.1} parent=0
    #allocation2 [shape = 'u8[8192]{0}', space=vmem, size = 0x2000, scoped, tag = 'input window, operand 0, single buffered']
    #allocation3 [shape = 's32[1]{0}', space=sflag, size = 0x4, scoped, tag = 'scoped memory for tpu_custom_call.1']
    #allocation4 [shape = 's32[1]{0}', space=sflag, size = 0x4, scoped, tag = 'scoped memory for tpu_custom_call.1']
    #allocation5 [shape = 'u8[8192]{0}', space=vmem, size = 0x2000, scoped, tag = 'input window, operand 1, single buffered']
    #allocation6 [shape = 's32[1]{0}', space=sflag, size = 0x4, scoped, tag = 'scoped memory for tpu_custom_call.1']
    #allocation7 [shape = 'u8[4096]{0}', space=vmem, size = 0x1000, scoped, tag = 'output window, operand 0, single buffered']
    %7 = vsyncpa [#allocation3], 0
    %8 = vsyncpa [#allocation6], 0
    %9 = vsyncpa [#allocation4], 0
    // Predicated region
    $region2: #{tpu_custom_call.1} parent=1 // pred_check
      _
    $region3: #{tpu_custom_call.1} parent=1 // pred_check_branch
      %11 = sbr.rel (0) target = $region5
    $region4: #{tpu_custom_call.1} parent=1 // pred_region
      %s12 = sadd.s32 0, 0
      %s13 = smul.u32 2, %s12
      %s15 = ssub.s32 256, 256
      %16 = vsyncadd [#allocation3], %s15
      %s17 = smul.addr %s13, 128
      %s18 = scalar_lea.hbm %s0, %s17
      %s19 = sshll.u32 [#allocation2], 4
      %s20 = int_to_ptr.vmem [resolvable:$true] %s19
      %25 = dma.hbm_to_vmem [thread:$0]  %s18, 256, %s20, [#allocation3], 128, 128, 8
    $region5: #{tpu_custom_call.1} parent=1 // pred_fallthru
      _
    // Predicated region
    $region6: #{tpu_custom_call.1} parent=1 // pred_check
      _
    $region7: #{tpu_custom_call.1} parent=1 // pred_check_branch
      %27 = sbr.rel (0) target = $region9
    $region8: #{tpu_custom_call.1} parent=1 // pred_region
      %s28 = sadd.s32 0, 0
      %s29 = smul.u32 2, %s28
      %s31 = ssub.s32 256, 256
      %32 = vsyncadd [#allocation6], %s31
      %s33 = smul.addr %s29, 128
      %s34 = scalar_lea.hbm %s1, %s33
      %s35 = sshll.u32 [#allocation5], 4
      %s36 = int_to_ptr.vmem [resolvable:$true] %s35
      %41 = dma.hbm_to_vmem [thread:$0]  %s34, 256, %s36, [#allocation6], 128, 128, 8
    $region9: #{tpu_custom_call.1} parent=1 // pred_fallthru
      _
    // Predicated region
    $region10: #{tpu_custom_call.1} parent=1 // pred_check
      _
    $region11: #{tpu_custom_call.1} parent=1 // pred_check_branch
      %43 = sbr.rel (0) target = $region13
    $region12: #{tpu_custom_call.1} parent=1 // pred_region
      %44 = dma.done [#allocation3], 256
    $region13: #{tpu_custom_call.1} parent=1 // pred_fallthru
      _
    // Predicated region
    $region14: #{tpu_custom_call.1} parent=1 // pred_check
      _
    $region15: #{tpu_custom_call.1} parent=1 // pred_check_branch
      %46 = sbr.rel (0) target = $region17
    $region16: #{tpu_custom_call.1} parent=1 // pred_region
      %47 = dma.done [#allocation6], 256
    $region17: #{tpu_custom_call.1} parent=1 // pred_fallthru
      _
    %s48 = sadd.s32 0, 0
    %s49 = smul.u32 2, %s48
    %s50 = sadd.s32 0, 0
    %s51 = smul.u32 2, %s50
    %p52 = scmp.eq.s32.totalorder 0, 0
    // Predicated region
    $region18: #{tpu_custom_call.1} parent=1 // pred_check
      %p53 = pneg %p52
    $region19: #{tpu_custom_call.1} parent=1 // pred_check_branch
      %55 = sbr.rel (%p53) target = $region21
    $region20: #{tpu_custom_call.1} parent=1 // pred_region
      %56 = vst [vmem:[#allocation7] sm:$0xff] 0.0
    $region21: #{tpu_custom_call.1} parent=1 // pred_fallthru
      _
    %v57 = vld [vmem:[#allocation2] sm:$0xff]
    %v58 = vld [vmem:[#allocation2 + $0x8] sm:$0xff]
    %v59 = vld [vmem:[#allocation5] sm:$0xff]
    %v60 = vld [vmem:[#allocation5 + $0x8] sm:$0xff]
    %v61 = vmul.f32 %v57, 0.5
    %v62 = vmul.f32 %v58, 0.5
    %v63 = vtanh.pop %v61
    %v64 = vtanh.pop %v62
    %v65 = vmul.f32 %v63, 0.5
    %v66 = vmul.f32 %v64, 0.5
    %v67 = vadd.f32 %v65, 0.5
    %v68 = vadd.f32 %v66, 0.5
    %v69 = vsub.f32 0.5, %v65
    %v70 = vsub.f32 0.5, %v66
    %v71 = vadd.f32 %v69, 0.05
    %v72 = vadd.f32 %v70, 0.05
    %v73 = vmin.f32 %v71, 1.0
    %v74 = vmin.f32 %v72, 1.0
    %vm75 = vcmp.gt.f32.partialorder %v59, 0.0
    %vm76 = vcmp.gt.f32.partialorder %v60, 0.0
    %v77 = vsel %vm75, %v67, %v73
    %v78 = vsel %vm76, %v68, %v74
    %v79 = vmax.f32 %v77, 1e-08
    %v80 = vmax.f32 %v78, 1e-08
    %v81 = vlog2.pop %v79
    %v82 = vmul.f32 %v81, 0.6931472
    %v83 = vlog2.pop %v80
    %v84 = vmul.f32 %v83, 0.6931472
    %v85 = vsub.f32 1.0, %v77
    %v86 = vsub.f32 1.0, %v78
    %v87 = vmul.f32 %v85, %v85
    %v88 = vmul.f32 %v86, %v86
    %v89 = vmul.f32 %v87, %v87
    %v90 = vmul.f32 %v88, %v88
    %v91 = vsel %vm75, %v85, %v89
    %v92 = vsel %vm76, %v86, %v90
    %v93 = vmul.f32 %v82, %v91
    %v94 = vmul.f32 %v84, %v92
    %v95 = vld [vmem:[#allocation7] sm:$0xff]
    %v96 = vadd.f32 %v93, %v94
    %v97 = vadd.f32 %v95, %v96
    %98 = vst [vmem:[#allocation7] sm:$0xff] %v97
    // Predicated region
    $region22: #{tpu_custom_call.1} parent=1 // pred_check
      _
    $region23: #{tpu_custom_call.1} parent=1 // pred_check_branch
      %100 = sbr.rel (0) target = $region25
    $region24: #{tpu_custom_call.1} parent=1 // pred_region
      %s102 = ssub.s32 128, 128
      %103 = vsyncadd [#allocation4], %s102
      %s105 = sshll.u32 [#allocation7], 4
      %s106 = int_to_ptr.vmem [resolvable:$true] %s105
      %108 = dma.vmem_to_hbm [thread:$0]  %s106, 128, %s2, [#allocation4]
    $region25: #{tpu_custom_call.1} parent=1 // pred_fallthru
      _
    // Predicated region
    $region26: #{tpu_custom_call.1} parent=1 // pred_check
      _
    $region27: #{tpu_custom_call.1} parent=1 // pred_check_branch
      %110 = sbr.rel (0) target = $region29
    $region28: #{tpu_custom_call.1} parent=1 // pred_region
      %111 = dma.done [#allocation4], 128
    $region29: #{tpu_custom_call.1} parent=1 // pred_fallthru
      _
    %112 = vsyncpa [#allocation3], 1
    %113 = vsyncpa [#allocation6], 1
    %114 = vsyncpa [#allocation4], 1

</llo_original>
